<compile_context>
chip_gen: v7x
topology: tpu7x:2x2x1
jax: 0.10.0
libtpu: 0.0.40
codegen_flags: <defaults>
</compile_context>

<pallas_src>
import functools

import jax
import jax.numpy as jnp
from jax.experimental import pallas as pl
from jax.experimental.pallas import tpu as pltpu


# ----------------------------------------------------------------------------
# Fused Pallas kernel (one batch element per grid step)
# ----------------------------------------------------------------------------
def _gaussianize_kernel(x1f_ref, x2f_ref, w_ref, b_ref, lsf_ref, o_ref, *, H, W):
    """Fused 3x3 conv (pad=1) + log-scale + split + gaussianize.

    x1f_ref : (C, L)     bf16  zero-padded x1, spatially flattened, L = (H+3)*(W+2)
    x2f_ref : (C, Nw)    f32   x2 in the same flattened working layout, Nw = H*(W+2)
    w_ref   : (9, 2C, C) bf16  conv weight, tap-major, out-channels permuted (m | logs)
    b_ref   : (2C, 1)    f32   conv bias   (same output-channel permutation)
    lsf_ref : (2C, 1)    f32   log_scale_factor (same permutation)
    o_ref   : (C, Nw)    f32   z2 in the flattened working layout
    """
    C = x2f_ref.shape[0]
    Wp = W + 2
    Nw = H * Wp

    x1f = x1f_ref[...]          # (C, L) bf16 — whole padded slab stays in vregs/VMEM
    w = w_ref[...]              # (9, 2C, C) bf16

    # 3x3 conv == 9 accumulated (2C, C) @ (C, Nw) MXU matmuls over lane-shifted windows
    # of the flattened padded input.  The 2 extra columns per row (and the slack bottom
    # row) produce don't-care outputs that the wrapper crops off; this keeps every tap a
    # plain static lane-slice (no in-kernel reshape, no im2col tensor in HBM).
    acc = jnp.zeros((2 * C, Nw), jnp.float32)
    for ki in range(3):                       # statically unrolled (9 tiny taps)
        for kj in range(3):
            off = ki * Wp + kj                # static Python int
            tap = x1f[:, off:off + Nw]        # (C, Nw) bf16
            acc = acc + jnp.dot(w[ki * 3 + kj], tap,
                                preferred_element_type=jnp.float32)

    # h = (conv(x1) + bias) * exp(log_scale_factor).  Output channels were permuted at
    # parameter prep, so m == first C rows, logs == last C rows (contiguous halves).
    h = (acc + b_ref[...]) * jnp.exp(lsf_ref[...])
    m = h[:C, :]
    logs = h[C:, :]

    o_ref[...] = (x2f_ref[...] - m) * jnp.exp(-logs)


# ----------------------------------------------------------------------------
# Wrapper: layout plumbing (pad/flatten/crop) + pallas_call
# ----------------------------------------------------------------------------
def gaussianize_forward(x1, x2, params):
    """z2 = Gaussianize(x1, x2).  x1, x2: (B, C, H, W) NCHW float32."""
    B, C, H, W = x1.shape
    Wp = W + 2                      # working width (incl. the 2 conv halo columns)
    Nw = H * Wp                     # flattened working spatial size (lane axis)
    L = (H + 3) * Wp                # padded-flat length; the extra zero bottom row is
                                    # slack so every length-Nw tap window stays in bounds

    # Zero-pad x1 (1 top / 2 bottom rows, 1 left / 1 right cols), flatten spatial, bf16
    # (bf16 MXU operands also halve the HBM->VMEM DMA for the conv input).
    x1f = jnp.pad(x1, ((0, 0), (0, 0), (1, 2), (1, 1)))
    x1f = x1f.reshape(B, C, L).astype(jnp.bfloat16)
    # x2 in the same flattened working layout (2 don't-care columns per row, f32).
    x2f = jnp.pad(x2, ((0, 0), (0, 0), (0, 0), (0, 2)))
    x2f = x2f.reshape(B, C, Nw).astype(jnp.float32)

    kernel = functools.partial(_gaussianize_kernel, H=H, W=W)
    out = pl.pallas_call(
        kernel,
        out_shape=jax.ShapeDtypeStruct((B, C, Nw), jnp.float32),
        grid=(B,),
        in_specs=[
            pl.BlockSpec((None, C, L), lambda b: (b, 0, 0)),      # x1 (padded, flat)
            pl.BlockSpec((None, C, Nw), lambda b: (b, 0, 0)),     # x2 (flat)
            pl.BlockSpec((9, 2 * C, C), lambda b: (0, 0, 0)),     # conv weight (taps)
            pl.BlockSpec((2 * C, 1), lambda b: (0, 0)),           # conv bias
            pl.BlockSpec((2 * C, 1), lambda b: (0, 0)),           # log_scale_factor
        ],
        out_specs=pl.BlockSpec((None, C, Nw), lambda b: (b, 0, 0)),
        compiler_params=pltpu.CompilerParams(
            dimension_semantics=("parallel",)),                   # v7x: one batch per TC
    )(x1f, x2f, params["w"], params["b"], params["lsf"])

    # Drop the 2 halo columns per row -> (B, C, H, W) NCHW.
    return out.reshape(B, C, H, Wp)[..., :W]


# ----------------------------------------------------------------------------
# Parameters: module-layout init + one-time prep into the kernel layout
# ----------------------------------------------------------------------------
def init_gaussianize_params(key, n_channels, *, zero_init=True, scale=0.05):
    """Raw parameters in the PyTorch module's layout (OIHW weight, (2C,) bias, (2C,1,1) lsf).

    The module zero-inits everything (identity map); zero_init=False draws small random
    values so the numerical test actually exercises the math.
    """
    C = n_channels
    if zero_init:
        weight = jnp.zeros((2 * C, C, 3, 3), jnp.float32)
        bias = jnp.zeros((2 * C,), jnp.float32)
        lsf = jnp.zeros((2 * C, 1, 1), jnp.float32)
    else:
        kw, kb, kl = jax.random.split(key, 3)
        weight = scale * jax.random.normal(kw, (2 * C, C, 3, 3), jnp.float32)
        bias = scale * jax.random.normal(kb, (2 * C,), jnp.float32)
        lsf = scale * jax.random.normal(kl, (2 * C, 1, 1), jnp.float32)
    return {"weight": weight, "bias": bias, "log_scale_factor": lsf}


def prepare_params(raw):
    """PyTorch-layout params -> kernel layout (done once, outside the hot path).

    Output channels are permuted so the interleaved (m, logs) pairs become two contiguous
    halves -> the kernel splits h with cheap sublane slices instead of stride-2 lane gathers.
    Weight is reshaped tap-major (9, 2C, C) and cast to bf16 for the MXU.
    """
    weight = raw["weight"]                      # (2C, C, 3, 3)
    bias = raw["bias"]                          # (2C,)
    lsf = raw["log_scale_factor"]               # (2C, 1, 1)
    C2 = weight.shape[0]
    perm = jnp.concatenate([jnp.arange(0, C2, 2), jnp.arange(1, C2, 2)])
    w = jnp.transpose(weight[perm], (2, 3, 0, 1)).reshape(9, C2, C2 // 2)
    return {
        "w": w.astype(jnp.bfloat16),                                    # (9, 2C, C)
        "b": bias[perm].reshape(C2, 1).astype(jnp.float32),             # (2C, 1)
        "lsf": lsf.reshape(C2)[perm].reshape(C2, 1).astype(jnp.float32),  # (2C, 1)
    }


# ----------------------------------------------------------------------------
# Pure-JAX reference of the PyTorch forward (for correctness checking)
# ----------------------------------------------------------------------------
def gaussianize_reference(x1, x2, raw, *, bf16_operands=False):
    weight = raw["weight"]
    bias = raw["bias"].reshape(1, -1, 1, 1)
    lsf = raw["log_scale_factor"].reshape(1, -1, 1, 1)
    B, C, H, W = x1.shape
    if bf16_operands:
        # Mirror the kernel's MXU precision (bf16 operands, f32 accumulation), tap by tap.
        x1q = jnp.pad(x1, ((0, 0), (0, 0), (1, 1), (1, 1)))
        x1q = x1q.astype(jnp.bfloat16).astype(jnp.float32)
        wq = weight.astype(jnp.bfloat16).astype(jnp.float32)
        h = jnp.zeros((B, 2 * C, H, W), jnp.float32)
        for ki in range(3):
            for kj in range(3):
                tap = x1q[:, :, ki:ki + H, kj:kj + W]
                h = h + jnp.einsum("oc,bchw->bohw", wq[:, :, ki, kj], tap,
                                   precision=jax.lax.Precision.HIGHEST)
        h = h + bias
    else:
        h = jax.lax.conv_general_dilated(
            x1, weight, window_strides=(1, 1), padding=((1, 1), (1, 1)),
            dimension_numbers=("NCHW", "OIHW", "NCHW"),
            precision=jax.lax.Precision.HIGHEST) + bias
    h = h * jnp.exp(lsf)
    m, logs = h[:, 0::2, :, :], h[:, 1::2, :, :]
    return (x2 - m) * jnp.exp(-logs)


# ----------------------------------------------------------------------------
if __name__ == "__main__":
    B, C, H, W = 2, 4, 16, 16
    key = jax.random.PRNGKey(0)
    kx1, kx2, kp = jax.random.split(key, 3)
    x1 = jax.random.normal(kx1, (B, C, H, W), jnp.float32)
    x2 = jax.random.normal(kx2, (B, C, H, W), jnp.float32)

    fwd = jax.jit(gaussianize_forward)

    # (1) Random (non-identity) parameters -> exercise conv / scale / split / gaussianize.
    raw = init_gaussianize_params(kp, C, zero_init=False)
    z2 = jax.block_until_ready(fwd(x1, x2, prepare_params(raw)))
    assert z2.shape == (B, C, H, W), z2.shape
    assert bool(jnp.isfinite(z2).all())

    # Tight check vs. a reference that mirrors the kernel's bf16-operand MXU precision.
    ref_bf16 = gaussianize_reference(x1, x2, raw, bf16_operands=True)
    assert jnp.allclose(z2, ref_bf16, atol=1e-3, rtol=1e-3), \
        float(jnp.max(jnp.abs(z2 - ref_bf16)))
    # Loose check vs. the full-f32 PyTorch-equivalent reference (documents bf16 MXU error).
    ref_f32 = gaussianize_reference(x1, x2, raw, bf16_operands=False)
    assert jnp.allclose(z2, ref_f32, atol=5e-2, rtol=5e-2), \
        float(jnp.max(jnp.abs(z2 - ref_f32)))

    # (2) The module's actual zero-init (identity conv) -> z2 == x2 exactly.
    raw0 = init_gaussianize_params(kp, C, zero_init=True)
    z2_id = jax.block_until_ready(fwd(x1, x2, prepare_params(raw0)))
    assert jnp.allclose(z2_id, x2, atol=1e-6)

    print("KERNEL_OK")
</pallas_src>

<mosaic_0001>
module attributes {stable_mosaic.version = 11 : i64} {
  func.func @_gaussianize_kernel(%arg0: i32, %arg1: memref<1x4x342xbf16, #tpu.memory_space<vmem>>, %arg2: memref<1x4x288xf32, #tpu.memory_space<vmem>>, %arg3: memref<9x8x4xbf16, #tpu.memory_space<vmem>>, %arg4: memref<8x1xf32, #tpu.memory_space<vmem>>, %arg5: memref<8x1xf32, #tpu.memory_space<vmem>>, %arg6: memref<1x4x288xf32, #tpu.memory_space<vmem>>) attributes {dimension_semantics = [#tpu.dimension_semantics<parallel>], iteration_bounds = array<i64: 2>, scalar_prefetch = 0 : i64, scratch_operands = 0 : i64, tpu.core_type = #tpu.core_type<tc>, window_params = [{transform_indices = @transform_0, window_bounds = array<i64: 1, 4, 342>}, {transform_indices = @transform_1, window_bounds = array<i64: 1, 4, 288>}, {pipeline_mode = #tpu.pipeline_mode<synchronous>, transform_indices = @transform_2, window_bounds = array<i64: 9, 8, 4>}, {pipeline_mode = #tpu.pipeline_mode<synchronous>, transform_indices = @transform_3, window_bounds = array<i64: 8, 1>}, {pipeline_mode = #tpu.pipeline_mode<synchronous>, transform_indices = @transform_4, window_bounds = array<i64: 8, 1>}, {transform_indices = @transform_5, window_bounds = array<i64: 1, 4, 288>}]} {
    %c0 = arith.constant 0 : index
    %c0_0 = arith.constant 0 : index
    %c0_1 = arith.constant 0 : index
    %0 = vector.load %arg1[%c0, %c0_0, %c0_1] : memref<1x4x342xbf16, #tpu.memory_space<vmem>>, vector<1x4x342xbf16>
    %1 = vector.shape_cast %0 : vector<1x4x342xbf16> to vector<4x342xbf16>
    %c0_2 = arith.constant 0 : index
    %c0_3 = arith.constant 0 : index
    %c0_4 = arith.constant 0 : index
    %2 = vector.load %arg3[%c0_2, %c0_3, %c0_4] : memref<9x8x4xbf16, #tpu.memory_space<vmem>>, vector<9x8x4xbf16>
    %cst = arith.constant 0.000000e+00 : f32
    %3 = vector.broadcast %cst : f32 to vector<8x288xf32>
    %4 = vector.extract_strided_slice %1 {offsets = [0, 0], sizes = [4, 288], strides = [1, 1]} : vector<4x342xbf16> to vector<4x288xbf16>
    %5 = vector.extract_strided_slice %2 {offsets = [0, 0, 0], sizes = [1, 8, 4], strides = [1, 1, 1]} : vector<9x8x4xbf16> to vector<1x8x4xbf16>
    %6 = vector.shape_cast %5 : vector<1x8x4xbf16> to vector<8x4xbf16>
    %cst_5 = arith.constant dense<0.000000e+00> : vector<8x288xf32>
    %7 = tpu.matmul %6, %4, %cst_5 {dimension_numbers = #tpu.dot_dimension_numbers<[1], [0], [0], [1], [0, 0, 1, 1], [], []>} : vector<8x4xbf16>, vector<4x288xbf16>, vector<8x288xf32> -> vector<8x288xf32>
    %8 = arith.addf %3, %7 : vector<8x288xf32>
    %9 = vector.extract_strided_slice %1 {offsets = [0, 1], sizes = [4, 288], strides = [1, 1]} : vector<4x342xbf16> to vector<4x288xbf16>
    %10 = vector.extract_strided_slice %2 {offsets = [1, 0, 0], sizes = [1, 8, 4], strides = [1, 1, 1]} : vector<9x8x4xbf16> to vector<1x8x4xbf16>
    %11 = vector.shape_cast %10 : vector<1x8x4xbf16> to vector<8x4xbf16>
    %cst_6 = arith.constant dense<0.000000e+00> : vector<8x288xf32>
    %12 = tpu.matmul %11, %9, %cst_6 {dimension_numbers = #tpu.dot_dimension_numbers<[1], [0], [0], [1], [0, 0, 1, 1], [], []>} : vector<8x4xbf16>, vector<4x288xbf16>, vector<8x288xf32> -> vector<8x288xf32>
    %13 = arith.addf %8, %12 : vector<8x288xf32>
    %14 = vector.extract_strided_slice %1 {offsets = [0, 2], sizes = [4, 288], strides = [1, 1]} : vector<4x342xbf16> to vector<4x288xbf16>
    %15 = vector.extract_strided_slice %2 {offsets = [2, 0, 0], sizes = [1, 8, 4], strides = [1, 1, 1]} : vector<9x8x4xbf16> to vector<1x8x4xbf16>
    %16 = vector.shape_cast %15 : vector<1x8x4xbf16> to vector<8x4xbf16>
    %cst_7 = arith.constant dense<0.000000e+00> : vector<8x288xf32>
    %17 = tpu.matmul %16, %14, %cst_7 {dimension_numbers = #tpu.dot_dimension_numbers<[1], [0], [0], [1], [0, 0, 1, 1], [], []>} : vector<8x4xbf16>, vector<4x288xbf16>, vector<8x288xf32> -> vector<8x288xf32>
    %18 = arith.addf %13, %17 : vector<8x288xf32>
    %19 = vector.extract_strided_slice %1 {offsets = [0, 18], sizes = [4, 288], strides = [1, 1]} : vector<4x342xbf16> to vector<4x288xbf16>
    %20 = vector.extract_strided_slice %2 {offsets = [3, 0, 0], sizes = [1, 8, 4], strides = [1, 1, 1]} : vector<9x8x4xbf16> to vector<1x8x4xbf16>
    %21 = vector.shape_cast %20 : vector<1x8x4xbf16> to vector<8x4xbf16>
    %cst_8 = arith.constant dense<0.000000e+00> : vector<8x288xf32>
    %22 = tpu.matmul %21, %19, %cst_8 {dimension_numbers = #tpu.dot_dimension_numbers<[1], [0], [0], [1], [0, 0, 1, 1], [], []>} : vector<8x4xbf16>, vector<4x288xbf16>, vector<8x288xf32> -> vector<8x288xf32>
    %23 = arith.addf %18, %22 : vector<8x288xf32>
    %24 = vector.extract_strided_slice %1 {offsets = [0, 19], sizes = [4, 288], strides = [1, 1]} : vector<4x342xbf16> to vector<4x288xbf16>
    %25 = vector.extract_strided_slice %2 {offsets = [4, 0, 0], sizes = [1, 8, 4], strides = [1, 1, 1]} : vector<9x8x4xbf16> to vector<1x8x4xbf16>
    %26 = vector.shape_cast %25 : vector<1x8x4xbf16> to vector<8x4xbf16>
    %cst_9 = arith.constant dense<0.000000e+00> : vector<8x288xf32>
    %27 = tpu.matmul %26, %24, %cst_9 {dimension_numbers = #tpu.dot_dimension_numbers<[1], [0], [0], [1], [0, 0, 1, 1], [], []>} : vector<8x4xbf16>, vector<4x288xbf16>, vector<8x288xf32> -> vector<8x288xf32>
    %28 = arith.addf %23, %27 : vector<8x288xf32>
    %29 = vector.extract_strided_slice %1 {offsets = [0, 20], sizes = [4, 288], strides = [1, 1]} : vector<4x342xbf16> to vector<4x288xbf16>
    %30 = vector.extract_strided_slice %2 {offsets = [5, 0, 0], sizes = [1, 8, 4], strides = [1, 1, 1]} : vector<9x8x4xbf16> to vector<1x8x4xbf16>
    %31 = vector.shape_cast %30 : vector<1x8x4xbf16> to vector<8x4xbf16>
    %cst_10 = arith.constant dense<0.000000e+00> : vector<8x288xf32>
    %32 = tpu.matmul %31, %29, %cst_10 {dimension_numbers = #tpu.dot_dimension_numbers<[1], [0], [0], [1], [0, 0, 1, 1], [], []>} : vector<8x4xbf16>, vector<4x288xbf16>, vector<8x288xf32> -> vector<8x288xf32>
    %33 = arith.addf %28, %32 : vector<8x288xf32>
    %34 = vector.extract_strided_slice %1 {offsets = [0, 36], sizes = [4, 288], strides = [1, 1]} : vector<4x342xbf16> to vector<4x288xbf16>
    %35 = vector.extract_strided_slice %2 {offsets = [6, 0, 0], sizes = [1, 8, 4], strides = [1, 1, 1]} : vector<9x8x4xbf16> to vector<1x8x4xbf16>
    %36 = vector.shape_cast %35 : vector<1x8x4xbf16> to vector<8x4xbf16>
    %cst_11 = arith.constant dense<0.000000e+00> : vector<8x288xf32>
    %37 = tpu.matmul %36, %34, %cst_11 {dimension_numbers = #tpu.dot_dimension_numbers<[1], [0], [0], [1], [0, 0, 1, 1], [], []>} : vector<8x4xbf16>, vector<4x288xbf16>, vector<8x288xf32> -> vector<8x288xf32>
    %38 = arith.addf %33, %37 : vector<8x288xf32>
    %39 = vector.extract_strided_slice %1 {offsets = [0, 37], sizes = [4, 288], strides = [1, 1]} : vector<4x342xbf16> to vector<4x288xbf16>
    %40 = vector.extract_strided_slice %2 {offsets = [7, 0, 0], sizes = [1, 8, 4], strides = [1, 1, 1]} : vector<9x8x4xbf16> to vector<1x8x4xbf16>
    %41 = vector.shape_cast %40 : vector<1x8x4xbf16> to vector<8x4xbf16>
    %cst_12 = arith.constant dense<0.000000e+00> : vector<8x288xf32>
    %42 = tpu.matmul %41, %39, %cst_12 {dimension_numbers = #tpu.dot_dimension_numbers<[1], [0], [0], [1], [0, 0, 1, 1], [], []>} : vector<8x4xbf16>, vector<4x288xbf16>, vector<8x288xf32> -> vector<8x288xf32>
    %43 = arith.addf %38, %42 : vector<8x288xf32>
    %44 = vector.extract_strided_slice %1 {offsets = [0, 38], sizes = [4, 288], strides = [1, 1]} : vector<4x342xbf16> to vector<4x288xbf16>
    %45 = vector.extract_strided_slice %2 {offsets = [8, 0, 0], sizes = [1, 8, 4], strides = [1, 1, 1]} : vector<9x8x4xbf16> to vector<1x8x4xbf16>
    %46 = vector.shape_cast %45 : vector<1x8x4xbf16> to vector<8x4xbf16>
    %cst_13 = arith.constant dense<0.000000e+00> : vector<8x288xf32>
    %47 = tpu.matmul %46, %44, %cst_13 {dimension_numbers = #tpu.dot_dimension_numbers<[1], [0], [0], [1], [0, 0, 1, 1], [], []>} : vector<8x4xbf16>, vector<4x288xbf16>, vector<8x288xf32> -> vector<8x288xf32>
    %48 = arith.addf %43, %47 : vector<8x288xf32>
    %c0_14 = arith.constant 0 : index
    %c0_15 = arith.constant 0 : index
    %49 = vector.load %arg4[%c0_14, %c0_15] : memref<8x1xf32, #tpu.memory_space<vmem>>, vector<8x1xf32>
    %50 = vector.broadcast %49 : vector<8x1xf32> to vector<8x288xf32>
    %51 = arith.addf %48, %50 : vector<8x288xf32>
    %c0_16 = arith.constant 0 : index
    %c0_17 = arith.constant 0 : index
    %52 = vector.load %arg5[%c0_16, %c0_17] : memref<8x1xf32, #tpu.memory_space<vmem>>, vector<8x1xf32>
    %53 = math.exp %52 : vector<8x1xf32>
    %54 = vector.broadcast %53 : vector<8x1xf32> to vector<8x288xf32>
    %55 = arith.mulf %51, %54 : vector<8x288xf32>
    %56 = vector.extract_strided_slice %55 {offsets = [0, 0], sizes = [4, 288], strides = [1, 1]} : vector<8x288xf32> to vector<4x288xf32>
    %57 = vector.extract_strided_slice %55 {offsets = [4, 0], sizes = [4, 288], strides = [1, 1]} : vector<8x288xf32> to vector<4x288xf32>
    %c0_18 = arith.constant 0 : index
    %c0_19 = arith.constant 0 : index
    %c0_20 = arith.constant 0 : index
    %58 = vector.load %arg2[%c0_18, %c0_19, %c0_20] : memref<1x4x288xf32, #tpu.memory_space<vmem>>, vector<1x4x288xf32>
    %59 = vector.shape_cast %58 : vector<1x4x288xf32> to vector<4x288xf32>
    %60 = arith.subf %59, %56 : vector<4x288xf32>
    %cst_21 = arith.constant 0.000000e+00 : f32
    %61 = vector.broadcast %cst_21 : f32 to vector<4x288xf32>
    %62 = arith.subf %61, %57 : vector<4x288xf32>
    %63 = math.exp %62 : vector<4x288xf32>
    %64 = arith.mulf %60, %63 : vector<4x288xf32>
    %c0_22 = arith.constant 0 : index
    %c0_23 = arith.constant 0 : index
    %c0_24 = arith.constant 0 : index
    %65 = vector.load %arg6[%c0_22, %c0_23, %c0_24] : memref<1x4x288xf32, #tpu.memory_space<vmem>>, vector<1x4x288xf32>
    %66 = vector.shape_cast %65 : vector<1x4x288xf32> to vector<4x288xf32>
    %67 = vector.shape_cast %64 : vector<4x288xf32> to vector<1x4x288xf32>
    tpu.vector_store %arg6[%c0_22, %c0_23, %c0_24], %67 {strides = array<i32>} : memref<1x4x288xf32, #tpu.memory_space<vmem>>, vector<1x4x288xf32>,
    return
  }
  func.func @transform_0(%arg0: i32) -> (i32, i32, i32) {
    %c0_i32 = arith.constant 0 : i32
    %c0_i32_0 = arith.constant 0 : i32
    %c0_i32_1 = arith.constant 0 : i32
    return %arg0, %c0_i32, %c0_i32_0 : i32, i32, i32
  }
  func.func @transform_1(%arg0: i32) -> (i32, i32, i32) {
    %c0_i32 = arith.constant 0 : i32
    %c0_i32_0 = arith.constant 0 : i32
    %c0_i32_1 = arith.constant 0 : i32
    return %arg0, %c0_i32, %c0_i32_0 : i32, i32, i32
  }
  func.func @transform_2(%arg0: i32) -> (i32, i32, i32) {
    %c0_i32 = arith.constant 0 : i32
    %c0_i32_0 = arith.constant 0 : i32
    %c0_i32_1 = arith.constant 0 : i32
    %c0_i32_2 = arith.constant 0 : i32
    return %c0_i32, %c0_i32_0, %c0_i32_1 : i32, i32, i32
  }
  func.func @transform_3(%arg0: i32) -> (i32, i32) {
    %c0_i32 = arith.constant 0 : i32
    %c0_i32_0 = arith.constant 0 : i32
    %c0_i32_1 = arith.constant 0 : i32
    return %c0_i32, %c0_i32_0 : i32, i32
  }
  func.func @transform_4(%arg0: i32) -> (i32, i32) {
    %c0_i32 = arith.constant 0 : i32
    %c0_i32_0 = arith.constant 0 : i32
    %c0_i32_1 = arith.constant 0 : i32
    return %c0_i32, %c0_i32_0 : i32, i32
  }
  func.func @transform_5(%arg0: i32) -> (i32, i32, i32) {
    %c0_i32 = arith.constant 0 : i32
    %c0_i32_0 = arith.constant 0 : i32
    %c0_i32_1 = arith.constant 0 : i32
    return %arg0, %c0_i32, %c0_i32_0 : i32, i32, i32
  }
}

</mosaic_0001>

<llo_original>
// kernel: gaussianize_forward.1
$region0: #{gaussianize_forward.1}
  #allocation0 [shape = 'u32[]', space=smem, size = 0x4, offset = 0x4, fixed_abs, tag = 'smem constant byte address 0x4 - core index']
  #allocation1 [shape = 'u32[144,128]{1,0:T(1,128)}', space=vmem, size = 0x12000, scoped, tag = 'internal scratch']
  %s0 = inlined_call_operand.vmem [shape: bf16[2,4,342], index: 0, kind: input, shape index: {}]
  %s1 = inlined_call_operand.vmem [shape: f32[2,4,288], index: 1, kind: input, shape index: {}]
  %s2 = inlined_call_operand.vmem [shape: bf16[9,8,4], index: 2, kind: input, shape index: {}]
  %s3 = inlined_call_operand.vmem [shape: f32[8,1], index: 3, kind: input, shape index: {}]
  %s4 = inlined_call_operand.vmem [shape: f32[8,1], index: 4, kind: input, shape index: {}]
  %s5 = inlined_call_operand.vmem [shape: f32[2,4,288], index: 5, kind: output, shape index: {}]
  %s6 = sld [smem:[#allocation0]]
  $region53: #{gaussianize_forward.1} parent=0
    _
  %s8 = ssub.s32 1, %s6
  %s9 = scalar_select 0, %s8, %s6
  loop: start=0, step=1, limit=4
  $region2: #{gaussianize_forward.1} parent=0 // loop_pre_header
    _
  $region3: #{gaussianize_forward.1} parent=0 // loop_header
    %s11 = sphi 0, %s15
    %p12 = scmp.ge.s32.totalorder %s11, 4
    %s21 = sphi 0, %s23
    %s24 = sphi 0, %s21
    %s25 = sphi 0, %s24
    %s41 = sphi 0, %s25
    %s47 = sphi 0, %s49
    %s50 = sphi 0, %s47
    %s51 = sphi 0, %s50
    %s67 = sphi 0, %s51
    %s71 = sphi 0, %s71
    %s73 = sphi 0, %s71
    %s74 = sphi 0, %s73
    %s88 = sphi 0, %s74
    %s92 = sphi 0, %s92
    %s94 = sphi 0, %s92
    %s95 = sphi 0, %s94
    %s109 = sphi 0, %s95
    %s113 = sphi 0, %s113
    %s115 = sphi 0, %s113
    %s116 = sphi 0, %s115
    %s130 = sphi 0, %s116
    %s136 = sphi 0, %s138
    %s139 = sphi 0, %s136
    %s140 = sphi 0, %s139
    %s156 = sphi 0, %s140
  $region4: #{gaussianize_forward.1} parent=0 // loop_header_branch
    %14 = sbr.rel (%p12) target = $region8
  $region5: #{gaussianize_forward.1} parent=0 // loop_body
    %s16 = ssub.s32 %s11, 1
    %s17 = ssub.s32 %s11, 2
    %s18 = sadd.s32 %s11, 1
    %s19 = ssub.s32 %s11, %s18
    %p20 = scmp.eq.s32.totalorder %s19, 0
    %s22 = sadd.s32 %s21, 1
    %s23 = scalar_select %p20, %s21, %s22
    %p26 = pneg %p20
    %p27 = scmp.eq.s32.totalorder %s11, 1
    %p28 = por %p26, %p27
    %p29 = scmp.ne.s32.totalorder %s21, %s24
    %p30 = scmp.eq.s32.totalorder %s11, 0
    %p31 = por %p29, %p30
    %p32 = scmp.ne.s32.totalorder %s21, %s24
    %p33 = scmp.eq.s32.totalorder %s16, 1
    %p34 = por %p32, %p33
    %p35 = scmp.ne.s32.totalorder %s24, %s25
    %p36 = scmp.eq.s32.totalorder %s16, 0
    %p37 = por %p35, %p36
    %p38 = scmp.ne.s32.totalorder %s24, %s25
    %p39 = scmp.eq.s32.totalorder %s17, 1
    %p40 = por %p38, %p39
    %p42 = scmp.ne.s32.totalorder %s25, %s41
    %p43 = scmp.eq.s32.totalorder %s17, 0
    %p44 = por %p42, %p43
    %s45 = ssub.s32 %s11, %s18
    %p46 = scmp.eq.s32.totalorder %s45, 0
    %s48 = sadd.s32 %s47, 1
    %s49 = scalar_select %p46, %s47, %s48
    %p52 = pneg %p46
    %p53 = scmp.eq.s32.totalorder %s11, 1
    %p54 = por %p52, %p53
    %p55 = scmp.ne.s32.totalorder %s47, %s50
    %p56 = scmp.eq.s32.totalorder %s11, 0
    %p57 = por %p55, %p56
    %p58 = scmp.ne.s32.totalorder %s47, %s50
    %p59 = scmp.eq.s32.totalorder %s16, 1
    %p60 = por %p58, %p59
    %p61 = scmp.ne.s32.totalorder %s50, %s51
    %p62 = scmp.eq.s32.totalorder %s16, 0
    %p63 = por %p61, %p62
    %p64 = scmp.ne.s32.totalorder %s50, %s51
    %p65 = scmp.eq.s32.totalorder %s17, 1
    %p66 = por %p64, %p65
    %p68 = scmp.ne.s32.totalorder %s51, %s67
    %p69 = scmp.eq.s32.totalorder %s17, 0
    %p70 = por %p68, %p69
    %s72 = sadd.s32 %s71, 1
    %p75 = scmp.eq.s32.totalorder %s11, 1
    %p76 = scmp.ne.s32.totalorder %s71, %s73
    %p77 = scmp.eq.s32.totalorder %s11, 0
    %p78 = por %p76, %p77
    %p79 = scmp.ne.s32.totalorder %s71, %s73
    %p80 = scmp.eq.s32.totalorder %s16, 1
    %p81 = por %p79, %p80
    %p82 = scmp.ne.s32.totalorder %s73, %s74
    %p83 = scmp.eq.s32.totalorder %s16, 0
    %p84 = por %p82, %p83
    %p85 = scmp.ne.s32.totalorder %s73, %s74
    %p86 = scmp.eq.s32.totalorder %s17, 1
    %p87 = por %p85, %p86
    %p89 = scmp.ne.s32.totalorder %s74, %s88
    %p90 = scmp.eq.s32.totalorder %s17, 0
    %p91 = por %p89, %p90
    %s93 = sadd.s32 %s92, 1
    %p96 = scmp.eq.s32.totalorder %s11, 1
    %p97 = scmp.ne.s32.totalorder %s92, %s94
    %p98 = scmp.eq.s32.totalorder %s11, 0
    %p99 = por %p97, %p98
    %p100 = scmp.ne.s32.totalorder %s92, %s94
    %p101 = scmp.eq.s32.totalorder %s16, 1
    %p102 = por %p100, %p101
    %p103 = scmp.ne.s32.totalorder %s94, %s95
    %p104 = scmp.eq.s32.totalorder %s16, 0
    %p105 = por %p103, %p104
    %p106 = scmp.ne.s32.totalorder %s94, %s95
    %p107 = scmp.eq.s32.totalorder %s17, 1
    %p108 = por %p106, %p107
    %p110 = scmp.ne.s32.totalorder %s95, %s109
    %p111 = scmp.eq.s32.totalorder %s17, 0
    %p112 = por %p110, %p111
    %s114 = sadd.s32 %s113, 1
    %p117 = scmp.eq.s32.totalorder %s11, 1
    %p118 = scmp.ne.s32.totalorder %s113, %s115
    %p119 = scmp.eq.s32.totalorder %s11, 0
    %p120 = por %p118, %p119
    %p121 = scmp.ne.s32.totalorder %s113, %s115
    %p122 = scmp.eq.s32.totalorder %s16, 1
    %p123 = por %p121, %p122
    %p124 = scmp.ne.s32.totalorder %s115, %s116
    %p125 = scmp.eq.s32.totalorder %s16, 0
    %p126 = por %p124, %p125
    %p127 = scmp.ne.s32.totalorder %s115, %s116
    %p128 = scmp.eq.s32.totalorder %s17, 1
    %p129 = por %p127, %p128
    %p131 = scmp.ne.s32.totalorder %s116, %s130
    %p132 = scmp.eq.s32.totalorder %s17, 0
    %p133 = por %p131, %p132
    %s134 = ssub.s32 %s11, %s18
    %p135 = scmp.eq.s32.totalorder %s134, 0
    %s137 = sadd.s32 %s136, 1
    %s138 = scalar_select %p135, %s136, %s137
    %p141 = pneg %p135
    %p142 = scmp.eq.s32.totalorder %s11, 1
    %p143 = por %p141, %p142
    %p144 = scmp.ne.s32.totalorder %s136, %s139
    %p145 = scmp.eq.s32.totalorder %s11, 0
    %p146 = por %p144, %p145
    %p147 = scmp.ne.s32.totalorder %s136, %s139
    %p148 = scmp.eq.s32.totalorder %s16, 1
    %p149 = por %p147, %p148
    %p150 = scmp.ne.s32.totalorder %s139, %s140
    %p151 = scmp.eq.s32.totalorder %s16, 0
    %p152 = por %p150, %p151
    %p153 = scmp.ne.s32.totalorder %s139, %s140
    %p154 = scmp.eq.s32.totalorder %s17, 1
    %p155 = por %p153, %p154
    %p157 = scmp.ne.s32.totalorder %s140, %s156
    %p158 = scmp.eq.s32.totalorder %s17, 0
    %p159 = por %p157, %p158
    %p160 = scmp.le.s32.totalorder 1, %s11
    %p161 = scmp.lt.s32.totalorder %s11, 3
    %p162 = pnand %p160, %p161
    %p163 = pneg %p162
    // Predicated region
    $region9: #{gaussianize_forward.1} parent=5 // pred_check
      _
    $region10: #{gaussianize_forward.1} parent=5 // pred_check_branch
      %165 = sbr.rel (%p162) target = $region12
    $region11: #{gaussianize_forward.1} parent=5 // pred_region
      %s166 = ssub.s32 %s11, 1
      // Predicated region
      $region13: #{gaussianize_forward.1} parent=11 // pred_check
        %p167 = pneg %p84
      $region14: #{gaussianize_forward.1} parent=11 // pred_check_branch
        %169 = sbr.rel (%p167) target = $region16
      $region15: #{gaussianize_forward.1} parent=11 // pred_region
        _
      $region16: #{gaussianize_forward.1} parent=11 // pred_fallthru
        _
      // Predicated region
      $region17: #{gaussianize_forward.1} parent=11 // pred_check
        %p170 = pneg %p105
      $region18: #{gaussianize_forward.1} parent=11 // pred_check_branch
        %172 = sbr.rel (%p170) target = $region20
      $region19: #{gaussianize_forward.1} parent=11 // pred_region
        _
      $region20: #{gaussianize_forward.1} parent=11 // pred_fallthru
        _
      // Predicated region
      $region21: #{gaussianize_forward.1} parent=11 // pred_check
        %p173 = pneg %p126
      $region22: #{gaussianize_forward.1} parent=11 // pred_check_branch
        %175 = sbr.rel (%p173) target = $region24
      $region23: #{gaussianize_forward.1} parent=11 // pred_region
        _
      $region24: #{gaussianize_forward.1} parent=11 // pred_fallthru
        _
    $region12: #{gaussianize_forward.1} parent=5 // pred_fallthru
      _
    %p176 = scmp.lt.s32.totalorder %s11, 2
    // Predicated region
    $region25: #{gaussianize_forward.1} parent=5 // pred_check
      %p177 = pneg %p176
    $region26: #{gaussianize_forward.1} parent=5 // pred_check_branch
      %179 = sbr.rel (%p177) target = $region28
    $region27: #{gaussianize_forward.1} parent=5 // pred_region
      // Predicated region
      $region29: #{gaussianize_forward.1} parent=27 // pred_check
        %p180 = pneg %p31
      $region30: #{gaussianize_forward.1} parent=27 // pred_check_branch
        %182 = sbr.rel (%p180) target = $region32
      $region31: #{gaussianize_forward.1} parent=27 // pred_region
        %p183 = scmp.lt.s32.totalorder %s11, 1
        %s184 = scalar_select %p183, %s11, 1
        %s185 = smul.addr %s184, 3
        %s186 = smul.addr %s185, 2
        %s187 = scalar_lea.vmem %s0, %s186
      $region32: #{gaussianize_forward.1} parent=27 // pred_fallthru
        _
      // Predicated region
      $region33: #{gaussianize_forward.1} parent=27 // pred_check
        %p188 = pneg %p57
      $region34: #{gaussianize_forward.1} parent=27 // pred_check_branch
        %190 = sbr.rel (%p188) target = $region36
      $region35: #{gaussianize_forward.1} parent=27 // pred_region
        %p191 = scmp.lt.s32.totalorder %s11, 1
        %s192 = scalar_select %p191, %s11, 1
        %s193 = smul.addr %s192, 3
        %s194 = smul.addr %s193, 4
        %s195 = scalar_lea.vmem %s1, %s194
      $region36: #{gaussianize_forward.1} parent=27 // pred_fallthru
        _
    $region28: #{gaussianize_forward.1} parent=5 // pred_fallthru
      _
    %p196 = scmp.le.s32.totalorder 1, %s11
    %p197 = scmp.lt.s32.totalorder %s11, 3
    %p198 = pnand %p196, %p197
    %p199 = pneg %p198
    // Predicated region
    $region37: #{gaussianize_forward.1} parent=5 // pred_check
      _
    $region38: #{gaussianize_forward.1} parent=5 // pred_check_branch
      %201 = sbr.rel (%p198) target = $region40
    $region39: #{gaussianize_forward.1} parent=5 // pred_region
      %s202 = ssub.s32 %s11, 1
      %p203 = scmp.lt.s32.totalorder %s16, 1
      %s204 = scalar_select %p203, %s16, 1
      %s205 = smul.addr %s204, 3
      %s206 = smul.addr %s205, 2
      %s207 = scalar_lea.vmem %s0, %s206
      %p208 = pneg %p37
      %p209 = pneg %p34
      %p210 = scmp.lt.s32.totalorder %s16, 1
      %s211 = scalar_select %p210, %s16, 1
      %s212 = smul.addr %s211, 3
      %s213 = smul.addr %s212, 4
      %s214 = scalar_lea.vmem %s1, %s213
      %p215 = pneg %p63
      %p216 = pneg %p60
      %p217 = pneg %p84
      %p218 = pneg %p81
      %p219 = pneg %p105
      %p220 = pneg %p102
      %p221 = pneg %p126
      %p222 = pneg %p123
      %p223 = pneg %p152
      %p224 = pneg %p149
      %p225 = scmp.lt.s32.totalorder %s16, 1
      %s226 = scalar_select %p225, %s16, 1
      %s227 = smul.addr %s226, 3
      %s228 = smul.addr %s227, 4
      %s229 = scalar_lea.vmem %s5, %s228
      %p230 = scmp.lt.s32.totalorder %s16, 1
      %s231 = scalar_select %p230, %s16, 1
      %s232 = smul.addr %s231, 3
      %s233 = smul.addr %s232, 2
      %s234 = scalar_lea.vmem %s0, %s233
      %p235 = scmp.lt.s32.totalorder %s16, 1
      %s236 = scalar_select %p235, %s16, 1
      %s237 = smul.addr %s236, 3
      %s238 = smul.addr %s237, 4
      %s239 = scalar_lea.vmem %s1, %s238
      %p240 = scmp.lt.s32.totalorder %s16, 1
      %s241 = scalar_select %p240, %s16, 1
      %s242 = smul.addr %s241, 3
      %s243 = smul.addr %s242, 4
      %s244 = scalar_lea.vmem %s5, %s243
      %v246 = vld [vmem:[%s234] sm:$0x3f]
      %v247 = vld [vmem:[%s2] sm:$0xf]
      %v248 = vld [vmem:[%s2 + $0x4] sm:$0xf]
      %v249 = vld [vmem:[%s2 + $0x8] sm:$0xf]
      %v250 = vld [vmem:[%s2 + $0xc] sm:$0xf]
      %v251 = vld [vmem:[%s2 + $0x10] sm:$0xf]
      %v252 = vld [vmem:[%s2 + $0x14] sm:$0xf]
      %v253 = vld [vmem:[%s2 + $0x18] sm:$0xf]
      %v254 = vld [vmem:[%s2 + $0x1c] sm:$0xf]
      %v255 = vld [vmem:[%s2 + $0x20] sm:$0xf]
      %v257 = vcombine.high %v246, %v246
      %v259 = vunpack.c.l.s4 1983009808
      %v260 = vunpack.c.0.s8 %v259
      %v261 = vlaneseq
      %v262 = vshrl.u32 %v261, 7
      %v263 = vsub.s32 %v260, %v262
      %v264 = vrot.slane %v246, %v263
      %v266 = vunpack.c.l.s4 1983009808
      %v267 = vunpack.c.0.s8 %v266
      %v268 = vlaneseq
      %v269 = vshrl.u32 %v268, 7
      %v270 = vsub.s32 %v267, %v269
      %v271 = vrot.slane %v257, %v270
      %v272 = vcombine.high %v264, %v264
      %273 = vrot.lane.b32.xlu0 %v264, 127
      %v274 = vpop.permute.xlu0 %273
      %275 = vrot.lane.b32.xlu0 %v272, 127
      %v276 = vpop.permute.xlu0 %275
      %277 = vrot.lane.b32.xlu0 %v271, 127
      %v278 = vpop.permute.xlu0 %277
      %vm279 = vcmask 1039360
      %v280 = vsel %vm279, %v274, %v276
      %v281 = vsel %vm279, %v276, %v278
      %vm282 = vcmask 31744
      %v284 = vsel %vm282, %v248, 0
      %vm286 = vcmask 1041408
      %v288 = vsel %vm286, %v280, 0
      %v291 = vsel %vm286, %v281, 0
      %v294 = vsel %vm286, %v278, 0
      %296 = vmatprep.subr.bf16.mxu0 %v291
      %297 = vmatpush1.bf16.msra.mxu0 %v288
      %298 = vmatprep.subr.bf16.mxu0 0
      %299 = vmatpush1.bf16.msra.mxu0 0
      %300 = vmatprep.subr.bf16.mxu0 0
      %301 = vmatpush1.bf16.msra.mxu0 0
      %302 = vmatprep.subr.bf16.mxu0 0
      %303 = vmatpush1.bf16.msra.mxu0 0
      %304 = vmatprep.subr.bf16.mxu0 0
      %305 = vmatpush1.bf16.msra.mxu0 0
      %306 = vmatprep.subr.bf16.mxu0 0
      %307 = vmatpush1.bf16.msra.mxu0 0
      %308 = vmatprep.subr.bf16.mxu0 0
      %309 = vmatpush1.bf16.msra.mxu0 0
      %310 = vmatprep.subr.bf16.mxu0 0
      %311 = vmatpush1.bf16.msra.mxu0 0
      %312 = vmatprep.subr.bf16.mxu0 0
      %313 = vmatpush1.bf16.msra.mxu0 0
      %314 = vmatprep.subr.bf16.mxu0 0
      %315 = vmatpush1.bf16.msra.mxu0 0
      %316 = vmatprep.subr.bf16.mxu0 0
      %317 = vmatpush1.bf16.msra.mxu0 0
      %318 = vmatprep.subr.bf16.mxu0 0
      %319 = vmatpush1.bf16.msra.mxu0 0
      %320 = vmatprep.subr.bf16.mxu0 0
      %321 = vmatpush1.bf16.msra.mxu0 0
      %322 = vmatprep.subr.bf16.mxu0 0
      %323 = vmatpush1.bf16.msra.mxu0 0
      %324 = vmatprep.subr.bf16.mxu0 0
      %325 = vmatpush1.bf16.msra.mxu0 0
      %326 = vmatprep.subr.bf16.mxu0 0
      %327 = vmatpush1.bf16.msra.mxu0 0
      %328 = vmatprep.mubr.bf16.mxu0 0
      %329 = vmatmul.mubr.bf16.gmra.mrb[0].mxu0 %v284
      %v330 = vpop.f32.mrb[0].mxu0
      %v331 = vadd.f32 0.0, %v330
      %v332 = vpop.f32.mrb[0].mxu0
      %v333 = vadd.f32 0.0, %v332
      %v334 = vpop.f32.mrb[0].mxu0
      %v335 = vpop.f32.mrb[0].mxu0
      %336 = vdwg.mxu0
      %337 = vmatprep.subr.bf16.mxu0 0
      %338 = vmatpush1.bf16.msra.mxu0 %v294
      %339 = vmatprep.subr.bf16.mxu0 0
      %340 = vmatpush1.bf16.msra.mxu0 0
      %341 = vmatprep.subr.bf16.mxu0 0
      %342 = vmatpush1.bf16.msra.mxu0 0
      %343 = vmatprep.subr.bf16.mxu0 0
      %344 = vmatpush1.bf16.msra.mxu0 0
      %345 = vmatprep.subr.bf16.mxu0 0
      %346 = vmatpush1.bf16.msra.mxu0 0
      %347 = vmatprep.subr.bf16.mxu0 0
      %348 = vmatpush1.bf16.msra.mxu0 0
      %349 = vmatprep.subr.bf16.mxu0 0
      %350 = vmatpush1.bf16.msra.mxu0 0
      %351 = vmatprep.subr.bf16.mxu0 0
      %352 = vmatpush1.bf16.msra.mxu0 0
      %353 = vmatprep.subr.bf16.mxu0 0
      %354 = vmatpush1.bf16.msra.mxu0 0
      %355 = vmatprep.subr.bf16.mxu0 0
      %356 = vmatpush1.bf16.msra.mxu0 0
      %357 = vmatprep.subr.bf16.mxu0 0
      %358 = vmatpush1.bf16.msra.mxu0 0
      %359 = vmatprep.subr.bf16.mxu0 0
      %360 = vmatpush1.bf16.msra.mxu0 0
      %361 = vmatprep.subr.bf16.mxu0 0
      %362 = vmatpush1.bf16.msra.mxu0 0
      %363 = vmatprep.subr.bf16.mxu0 0
      %364 = vmatpush1.bf16.msra.mxu0 0
      %365 = vmatprep.subr.bf16.mxu0 0
      %366 = vmatpush1.bf16.msra.mxu0 0
      %367 = vmatprep.subr.bf16.mxu0 0
      %368 = vmatpush1.bf16.msra.mxu0 0
      %369 = vmatprep.mubr.bf16.mxu0 0
      %370 = vmatmul.mubr.bf16.gmra.mrb[0].mxu0 %v284
      %v371 = vpop.f32.mrb[0].mxu0
      %v372 = vadd.f32 0.0, %v371
      %v373 = vpop.f32.mrb[0].mxu0
      %v374 = vpop.f32.mrb[0].mxu0
      %v375 = vpop.f32.mrb[0].mxu0
      %376 = vdwg.mxu0
      %v378 = vsel %vm282, %v247, 0
      %v381 = vsel %vm286, %v264, 0
      %v384 = vsel %vm286, %v272, 0
      %v387 = vsel %vm286, %v271, 0
      %389 = vmatprep.subr.bf16.mxu0 %v384
      %390 = vmatpush1.bf16.msra.mxu0 %v381
      %391 = vmatprep.subr.bf16.mxu0 0
      %392 = vmatpush1.bf16.msra.mxu0 0
      %393 = vmatprep.subr.bf16.mxu0 0
      %394 = vmatpush1.bf16.msra.mxu0 0
      %395 = vmatprep.subr.bf16.mxu0 0
      %396 = vmatpush1.bf16.msra.mxu0 0
      %397 = vmatprep.subr.bf16.mxu0 0
      %398 = vmatpush1.bf16.msra.mxu0 0
      %399 = vmatprep.subr.bf16.mxu0 0
      %400 = vmatpush1.bf16.msra.mxu0 0
      %401 = vmatprep.subr.bf16.mxu0 0
      %402 = vmatpush1.bf16.msra.mxu0 0
      %403 = vmatprep.subr.bf16.mxu0 0
      %404 = vmatpush1.bf16.msra.mxu0 0
      %405 = vmatprep.subr.bf16.mxu0 0
      %406 = vmatpush1.bf16.msra.mxu0 0
      %407 = vmatprep.subr.bf16.mxu0 0
      %408 = vmatpush1.bf16.msra.mxu0 0
      %409 = vmatprep.subr.bf16.mxu0 0
      %410 = vmatpush1.bf16.msra.mxu0 0
      %411 = vmatprep.subr.bf16.mxu0 0
      %412 = vmatpush1.bf16.msra.mxu0 0
      %413 = vmatprep.subr.bf16.mxu0 0
      %414 = vmatpush1.bf16.msra.mxu0 0
      %415 = vmatprep.subr.bf16.mxu0 0
      %416 = vmatpush1.bf16.msra.mxu0 0
      %417 = vmatprep.subr.bf16.mxu0 0
      %418 = vmatpush1.bf16.msra.mxu0 0
      %419 = vmatprep.subr.bf16.mxu0 0
      %420 = vmatpush1.bf16.msra.mxu0 0
      %421 = vmatprep.mubr.bf16.mxu0 0
      %422 = vmatmul.mubr.bf16.gmra.mrb[0].mxu0 %v378
      %v423 = vpop.f32.mrb[0].mxu0
      %v424 = vadd.f32 %v331, %v423
      %v425 = vpop.f32.mrb[0].mxu0
      %v426 = vadd.f32 %v333, %v425
      %v427 = vpop.f32.mrb[0].mxu0
      %v428 = vpop.f32.mrb[0].mxu0
      %429 = vdwg.mxu0
      %430 = vmatprep.subr.bf16.mxu0 0
      %431 = vmatpush1.bf16.msra.mxu0 %v387
      %432 = vmatprep.subr.bf16.mxu0 0
      %433 = vmatpush1.bf16.msra.mxu0 0
      %434 = vmatprep.subr.bf16.mxu0 0
      %435 = vmatpush1.bf16.msra.mxu0 0
      %436 = vmatprep.subr.bf16.mxu0 0
      %437 = vmatpush1.bf16.msra.mxu0 0
      %438 = vmatprep.subr.bf16.mxu0 0
      %439 = vmatpush1.bf16.msra.mxu0 0
      %440 = vmatprep.subr.bf16.mxu0 0
      %441 = vmatpush1.bf16.msra.mxu0 0
      %442 = vmatprep.subr.bf16.mxu0 0
      %443 = vmatpush1.bf16.msra.mxu0 0
      %444 = vmatprep.subr.bf16.mxu0 0
      %445 = vmatpush1.bf16.msra.mxu0 0
      %446 = vmatprep.subr.bf16.mxu0 0
      %447 = vmatpush1.bf16.msra.mxu0 0
      %448 = vmatprep.subr.bf16.mxu0 0
      %449 = vmatpush1.bf16.msra.mxu0 0
      %450 = vmatprep.subr.bf16.mxu0 0
      %451 = vmatpush1.bf16.msra.mxu0 0
      %452 = vmatprep.subr.bf16.mxu0 0
      %453 = vmatpush1.bf16.msra.mxu0 0
      %454 = vmatprep.subr.bf16.mxu0 0
      %455 = vmatpush1.bf16.msra.mxu0 0
      %456 = vmatprep.subr.bf16.mxu0 0
      %457 = vmatpush1.bf16.msra.mxu0 0
      %458 = vmatprep.subr.bf16.mxu0 0
      %459 = vmatpush1.bf16.msra.mxu0 0
      %460 = vmatprep.subr.bf16.mxu0 0
      %461 = vmatpush1.bf16.msra.mxu0 0
      %462 = vmatprep.mubr.bf16.mxu0 0
      %463 = vmatmul.mubr.bf16.gmra.mrb[0].mxu0 %v378
      %v464 = vpop.f32.mrb[0].mxu0
      %v465 = vadd.f32 %v372, %v464
      %v466 = vpop.f32.mrb[0].mxu0
      %v467 = vpop.f32.mrb[0].mxu0
      %v468 = vpop.f32.mrb[0].mxu0
      %469 = vdwg.mxu0
      %470 = vrot.lane.b32.xlu0 %v264, 126
      %v471 = vpop.permute.xlu0 %470
      %472 = vrot.lane.b32.xlu0 %v272, 126
      %v473 = vpop.permute.xlu0 %472
      %474 = vrot.lane.b32.xlu0 %v271, 126
      %v475 = vpop.permute.xlu0 %474
      %vm476 = vcmask 1031168
      %v477 = vsel %vm476, %v471, %v473
      %v478 = vsel %vm476, %v473, %v475
      %v480 = vsel %vm282, %v249, 0
      %v483 = vsel %vm286, %v477, 0
      %v486 = vsel %vm286, %v478, 0
      %v489 = vsel %vm286, %v475, 0
      %491 = vmatprep.subr.bf16.mxu0 %v486
      %492 = vmatpush1.bf16.msra.mxu0 %v483
      %493 = vmatprep.subr.bf16.mxu0 0
      %494 = vmatpush1.bf16.msra.mxu0 0
      %495 = vmatprep.subr.bf16.mxu0 0
      %496 = vmatpush1.bf16.msra.mxu0 0
      %497 = vmatprep.subr.bf16.mxu0 0
      %498 = vmatpush1.bf16.msra.mxu0 0
      %499 = vmatprep.subr.bf16.mxu0 0
      %500 = vmatpush1.bf16.msra.mxu0 0
      %501 = vmatprep.subr.bf16.mxu0 0
      %502 = vmatpush1.bf16.msra.mxu0 0
      %503 = vmatprep.subr.bf16.mxu0 0
      %504 = vmatpush1.bf16.msra.mxu0 0
      %505 = vmatprep.subr.bf16.mxu0 0
      %506 = vmatpush1.bf16.msra.mxu0 0
      %507 = vmatprep.subr.bf16.mxu0 0
      %508 = vmatpush1.bf16.msra.mxu0 0
      %509 = vmatprep.subr.bf16.mxu0 0
      %510 = vmatpush1.bf16.msra.mxu0 0
      %511 = vmatprep.subr.bf16.mxu0 0
      %512 = vmatpush1.bf16.msra.mxu0 0
      %513 = vmatprep.subr.bf16.mxu0 0
      %514 = vmatpush1.bf16.msra.mxu0 0
      %515 = vmatprep.subr.bf16.mxu0 0
      %516 = vmatpush1.bf16.msra.mxu0 0
      %517 = vmatprep.subr.bf16.mxu0 0
      %518 = vmatpush1.bf16.msra.mxu0 0
      %519 = vmatprep.subr.bf16.mxu0 0
      %520 = vmatpush1.bf16.msra.mxu0 0
      %521 = vmatprep.subr.bf16.mxu0 0
      %522 = vmatpush1.bf16.msra.mxu0 0
      %523 = vmatprep.mubr.bf16.mxu0 0
      %524 = vmatmul.mubr.bf16.gmra.mrb[0].mxu0 %v480
      %v525 = vpop.f32.mrb[0].mxu0
      %v526 = vadd.f32 0.0, %v525
      %v527 = vpop.f32.mrb[0].mxu0
      %v528 = vadd.f32 0.0, %v527
      %v529 = vpop.f32.mrb[0].mxu0
      %v530 = vpop.f32.mrb[0].mxu0
      %531 = vdwg.mxu0
      %532 = vmatprep.subr.bf16.mxu0 0
      %533 = vmatpush1.bf16.msra.mxu0 %v489
      %534 = vmatprep.subr.bf16.mxu0 0
      %535 = vmatpush1.bf16.msra.mxu0 0
      %536 = vmatprep.subr.bf16.mxu0 0
      %537 = vmatpush1.bf16.msra.mxu0 0
      %538 = vmatprep.subr.bf16.mxu0 0
      %539 = vmatpush1.bf16.msra.mxu0 0
      %540 = vmatprep.subr.bf16.mxu0 0
      %541 = vmatpush1.bf16.msra.mxu0 0
      %542 = vmatprep.subr.bf16.mxu0 0
      %543 = vmatpush1.bf16.msra.mxu0 0
      %544 = vmatprep.subr.bf16.mxu0 0
      %545 = vmatpush1.bf16.msra.mxu0 0
      %546 = vmatprep.subr.bf16.mxu0 0
      %547 = vmatpush1.bf16.msra.mxu0 0
      %548 = vmatprep.subr.bf16.mxu0 0
      %549 = vmatpush1.bf16.msra.mxu0 0
      %550 = vmatprep.subr.bf16.mxu0 0
      %551 = vmatpush1.bf16.msra.mxu0 0
      %552 = vmatprep.subr.bf16.mxu0 0
      %553 = vmatpush1.bf16.msra.mxu0 0
      %554 = vmatprep.subr.bf16.mxu0 0
      %555 = vmatpush1.bf16.msra.mxu0 0
      %556 = vmatprep.subr.bf16.mxu0 0
      %557 = vmatpush1.bf16.msra.mxu0 0
      %558 = vmatprep.subr.bf16.mxu0 0
      %559 = vmatpush1.bf16.msra.mxu0 0
      %560 = vmatprep.subr.bf16.mxu0 0
      %561 = vmatpush1.bf16.msra.mxu0 0
      %562 = vmatprep.subr.bf16.mxu0 0
      %563 = vmatpush1.bf16.msra.mxu0 0
      %564 = vmatprep.mubr.bf16.mxu0 0
      %565 = vmatmul.mubr.bf16.gmra.mrb[0].mxu0 %v480
      %v566 = vpop.f32.mrb[0].mxu0
      %v567 = vadd.f32 0.0, %v566
      %v568 = vpop.f32.mrb[0].mxu0
      %v569 = vpop.f32.mrb[0].mxu0
      %v570 = vpop.f32.mrb[0].mxu0
      %571 = vdwg.mxu0
      %v572 = vadd.f32 %v424, %v526
      %v573 = vadd.f32 %v426, %v528
      %v574 = vadd.f32 %v465, %v567
      %575 = vrot.lane.b32.xlu0 %v264, 110
      %v576 = vpop.permute.xlu0 %575
      %577 = vrot.lane.b32.xlu0 %v272, 110
      %v578 = vpop.permute.xlu0 %577
      %579 = vrot.lane.b32.xlu0 %v271, 110
      %v580 = vpop.permute.xlu0 %579
      %vm581 = vcmask 900096
      %v582 = vsel %vm581, %v576, %v578
      %v583 = vsel %vm581, %v578, %v580
      %v585 = vsel %vm282, %v250, 0
      %v588 = vsel %vm286, %v582, 0
      %v591 = vsel %vm286, %v583, 0
      %v594 = vsel %vm286, %v580, 0
      %596 = vmatprep.subr.bf16.mxu0 %v591
      %597 = vmatpush1.bf16.msra.mxu0 %v588
      %598 = vmatprep.subr.bf16.mxu0 0
      %599 = vmatpush1.bf16.msra.mxu0 0
      %600 = vmatprep.subr.bf16.mxu0 0
      %601 = vmatpush1.bf16.msra.mxu0 0
      %602 = vmatprep.subr.bf16.mxu0 0
      %603 = vmatpush1.bf16.msra.mxu0 0
      %604 = vmatprep.subr.bf16.mxu0 0
      %605 = vmatpush1.bf16.msra.mxu0 0
      %606 = vmatprep.subr.bf16.mxu0 0
      %607 = vmatpush1.bf16.msra.mxu0 0
      %608 = vmatprep.subr.bf16.mxu0 0
      %609 = vmatpush1.bf16.msra.mxu0 0
      %610 = vmatprep.subr.bf16.mxu0 0
      %611 = vmatpush1.bf16.msra.mxu0 0
      %612 = vmatprep.subr.bf16.mxu0 0
      %613 = vmatpush1.bf16.msra.mxu0 0
      %614 = vmatprep.subr.bf16.mxu0 0
      %615 = vmatpush1.bf16.msra.mxu0 0
      %616 = vmatprep.subr.bf16.mxu0 0
      %617 = vmatpush1.bf16.msra.mxu0 0
      %618 = vmatprep.subr.bf16.mxu0 0
      %619 = vmatpush1.bf16.msra.mxu0 0
      %620 = vmatprep.subr.bf16.mxu0 0
      %621 = vmatpush1.bf16.msra.mxu0 0
      %622 = vmatprep.subr.bf16.mxu0 0
      %623 = vmatpush1.bf16.msra.mxu0 0
      %624 = vmatprep.subr.bf16.mxu0 0
      %625 = vmatpush1.bf16.msra.mxu0 0
      %626 = vmatprep.subr.bf16.mxu0 0
      %627 = vmatpush1.bf16.msra.mxu0 0
      %628 = vmatprep.mubr.bf16.mxu0 0
      %629 = vmatmul.mubr.bf16.gmra.mrb[0].mxu0 %v585
      %v630 = vpop.f32.mrb[0].mxu0
      %v631 = vadd.f32 0.0, %v630
      %v632 = vpop.f32.mrb[0].mxu0
      %v633 = vadd.f32 0.0, %v632
      %v634 = vpop.f32.mrb[0].mxu0
      %v635 = vpop.f32.mrb[0].mxu0
      %636 = vdwg.mxu0
      %637 = vmatprep.subr.bf16.mxu0 0
      %638 = vmatpush1.bf16.msra.mxu0 %v594
      %639 = vmatprep.subr.bf16.mxu0 0
      %640 = vmatpush1.bf16.msra.mxu0 0
      %641 = vmatprep.subr.bf16.mxu0 0
      %642 = vmatpush1.bf16.msra.mxu0 0
      %643 = vmatprep.subr.bf16.mxu0 0
      %644 = vmatpush1.bf16.msra.mxu0 0
      %645 = vmatprep.subr.bf16.mxu0 0
      %646 = vmatpush1.bf16.msra.mxu0 0
      %647 = vmatprep.subr.bf16.mxu0 0
      %648 = vmatpush1.bf16.msra.mxu0 0
      %649 = vmatprep.subr.bf16.mxu0 0
      %650 = vmatpush1.bf16.msra.mxu0 0
      %651 = vmatprep.subr.bf16.mxu0 0
      %652 = vmatpush1.bf16.msra.mxu0 0
      %653 = vmatprep.subr.bf16.mxu0 0
      %654 = vmatpush1.bf16.msra.mxu0 0
      %655 = vmatprep.subr.bf16.mxu0 0
      %656 = vmatpush1.bf16.msra.mxu0 0
      %657 = vmatprep.subr.bf16.mxu0 0
      %658 = vmatpush1.bf16.msra.mxu0 0
      %659 = vmatprep.subr.bf16.mxu0 0
      %660 = vmatpush1.bf16.msra.mxu0 0
      %661 = vmatprep.subr.bf16.mxu0 0
      %662 = vmatpush1.bf16.msra.mxu0 0
      %663 = vmatprep.subr.bf16.mxu0 0
      %664 = vmatpush1.bf16.msra.mxu0 0
      %665 = vmatprep.subr.bf16.mxu0 0
      %666 = vmatpush1.bf16.msra.mxu0 0
      %667 = vmatprep.subr.bf16.mxu0 0
      %668 = vmatpush1.bf16.msra.mxu0 0
      %669 = vmatprep.mubr.bf16.mxu0 0
      %670 = vmatmul.mubr.bf16.gmra.mrb[0].mxu0 %v585
      %v671 = vpop.f32.mrb[0].mxu0
      %v672 = vadd.f32 0.0, %v671
      %v673 = vpop.f32.mrb[0].mxu0
      %v674 = vpop.f32.mrb[0].mxu0
      %v675 = vpop.f32.mrb[0].mxu0
      %676 = vdwg.mxu0
      %v677 = vadd.f32 %v572, %v631
      %v678 = vadd.f32 %v573, %v633
      %v679 = vadd.f32 %v574, %v672
      %680 = vrot.lane.b32.xlu0 %v264, 109
      %v681 = vpop.permute.xlu0 %680
      %682 = vrot.lane.b32.xlu0 %v272, 109
      %v683 = vpop.permute.xlu0 %682
      %684 = vrot.lane.b32.xlu0 %v271, 109
      %v685 = vpop.permute.xlu0 %684
      %vm686 = vcmask 891904
      %v687 = vsel %vm686, %v681, %v683
      %v688 = vsel %vm686, %v683, %v685
      %v690 = vsel %vm282, %v251, 0
      %v693 = vsel %vm286, %v687, 0
      %v696 = vsel %vm286, %v688, 0
      %v699 = vsel %vm286, %v685, 0
      %701 = vmatprep.subr.bf16.mxu0 %v696
      %702 = vmatpush1.bf16.msra.mxu0 %v693
      %703 = vmatprep.subr.bf16.mxu0 0
      %704 = vmatpush1.bf16.msra.mxu0 0
      %705 = vmatprep.subr.bf16.mxu0 0
      %706 = vmatpush1.bf16.msra.mxu0 0
      %707 = vmatprep.subr.bf16.mxu0 0
      %708 = vmatpush1.bf16.msra.mxu0 0
      %709 = vmatprep.subr.bf16.mxu0 0
      %710 = vmatpush1.bf16.msra.mxu0 0
      %711 = vmatprep.subr.bf16.mxu0 0
      %712 = vmatpush1.bf16.msra.mxu0 0
      %713 = vmatprep.subr.bf16.mxu0 0
      %714 = vmatpush1.bf16.msra.mxu0 0
      %715 = vmatprep.subr.bf16.mxu0 0
      %716 = vmatpush1.bf16.msra.mxu0 0
      %717 = vmatprep.subr.bf16.mxu0 0
      %718 = vmatpush1.bf16.msra.mxu0 0
      %719 = vmatprep.subr.bf16.mxu0 0
      %720 = vmatpush1.bf16.msra.mxu0 0
      %721 = vmatprep.subr.bf16.mxu0 0
      %722 = vmatpush1.bf16.msra.mxu0 0
      %723 = vmatprep.subr.bf16.mxu0 0
      %724 = vmatpush1.bf16.msra.mxu0 0
      %725 = vmatprep.subr.bf16.mxu0 0
      %726 = vmatpush1.bf16.msra.mxu0 0
      %727 = vmatprep.subr.bf16.mxu0 0
      %728 = vmatpush1.bf16.msra.mxu0 0
      %729 = vmatprep.subr.bf16.mxu0 0
      %730 = vmatpush1.bf16.msra.mxu0 0
      %731 = vmatprep.subr.bf16.mxu0 0
      %732 = vmatpush1.bf16.msra.mxu0 0
      %733 = vmatprep.mubr.bf16.mxu0 0
      %734 = vmatmul.mubr.bf16.gmra.mrb[0].mxu0 %v690
      %v735 = vpop.f32.mrb[0].mxu0
      %v736 = vadd.f32 0.0, %v735
      %v737 = vpop.f32.mrb[0].mxu0
      %v738 = vadd.f32 0.0, %v737
      %v739 = vpop.f32.mrb[0].mxu0
      %v740 = vpop.f32.mrb[0].mxu0
      %741 = vdwg.mxu0
      %742 = vmatprep.subr.bf16.mxu0 0
      %743 = vmatpush1.bf16.msra.mxu0 %v699
      %744 = vmatprep.subr.bf16.mxu0 0
      %745 = vmatpush1.bf16.msra.mxu0 0
      %746 = vmatprep.subr.bf16.mxu0 0
      %747 = vmatpush1.bf16.msra.mxu0 0
      %748 = vmatprep.subr.bf16.mxu0 0
      %749 = vmatpush1.bf16.msra.mxu0 0
      %750 = vmatprep.subr.bf16.mxu0 0
      %751 = vmatpush1.bf16.msra.mxu0 0
      %752 = vmatprep.subr.bf16.mxu0 0
      %753 = vmatpush1.bf16.msra.mxu0 0
      %754 = vmatprep.subr.bf16.mxu0 0
      %755 = vmatpush1.bf16.msra.mxu0 0
      %756 = vmatprep.subr.bf16.mxu0 0
      %757 = vmatpush1.bf16.msra.mxu0 0
      %758 = vmatprep.subr.bf16.mxu0 0
      %759 = vmatpush1.bf16.msra.mxu0 0
      %760 = vmatprep.subr.bf16.mxu0 0
      %761 = vmatpush1.bf16.msra.mxu0 0
      %762 = vmatprep.subr.bf16.mxu0 0
      %763 = vmatpush1.bf16.msra.mxu0 0
      %764 = vmatprep.subr.bf16.mxu0 0
      %765 = vmatpush1.bf16.msra.mxu0 0
      %766 = vmatprep.subr.bf16.mxu0 0
      %767 = vmatpush1.bf16.msra.mxu0 0
      %768 = vmatprep.subr.bf16.mxu0 0
      %769 = vmatpush1.bf16.msra.mxu0 0
      %770 = vmatprep.subr.bf16.mxu0 0
      %771 = vmatpush1.bf16.msra.mxu0 0
      %772 = vmatprep.subr.bf16.mxu0 0
      %773 = vmatpush1.bf16.msra.mxu0 0
      %774 = vmatprep.mubr.bf16.mxu0 0
      %775 = vmatmul.mubr.bf16.gmra.mrb[0].mxu0 %v690
      %v776 = vpop.f32.mrb[0].mxu0
      %v777 = vadd.f32 0.0, %v776
      %v778 = vpop.f32.mrb[0].mxu0
      %v779 = vpop.f32.mrb[0].mxu0
      %v780 = vpop.f32.mrb[0].mxu0
      %781 = vdwg.mxu0
      %v782 = vadd.f32 %v677, %v736
      %v783 = vadd.f32 %v678, %v738
      %v784 = vadd.f32 %v679, %v777
      %785 = vrot.lane.b32.xlu0 %v264, 108
      %v786 = vpop.permute.xlu0 %785
      %787 = vrot.lane.b32.xlu0 %v272, 108
      %v788 = vpop.permute.xlu0 %787
      %789 = vrot.lane.b32.xlu0 %v271, 108
      %v790 = vpop.permute.xlu0 %789
      %vm791 = vcmask 883712
      %v792 = vsel %vm791, %v786, %v788
      %v793 = vsel %vm791, %v788, %v790
      %v795 = vsel %vm282, %v252, 0
      %v798 = vsel %vm286, %v792, 0
      %v801 = vsel %vm286, %v793, 0
      %v804 = vsel %vm286, %v790, 0
      %806 = vmatprep.subr.bf16.mxu0 %v801
      %807 = vmatpush1.bf16.msra.mxu0 %v798
      %808 = vmatprep.subr.bf16.mxu0 0
      %809 = vmatpush1.bf16.msra.mxu0 0
      %810 = vmatprep.subr.bf16.mxu0 0
      %811 = vmatpush1.bf16.msra.mxu0 0
      %812 = vmatprep.subr.bf16.mxu0 0
      %813 = vmatpush1.bf16.msra.mxu0 0
      %814 = vmatprep.subr.bf16.mxu0 0
      %815 = vmatpush1.bf16.msra.mxu0 0
      %816 = vmatprep.subr.bf16.mxu0 0
      %817 = vmatpush1.bf16.msra.mxu0 0
      %818 = vmatprep.subr.bf16.mxu0 0
      %819 = vmatpush1.bf16.msra.mxu0 0
      %820 = vmatprep.subr.bf16.mxu0 0
      %821 = vmatpush1.bf16.msra.mxu0 0
      %822 = vmatprep.subr.bf16.mxu0 0
      %823 = vmatpush1.bf16.msra.mxu0 0
      %824 = vmatprep.subr.bf16.mxu0 0
      %825 = vmatpush1.bf16.msra.mxu0 0
      %826 = vmatprep.subr.bf16.mxu0 0
      %827 = vmatpush1.bf16.msra.mxu0 0
      %828 = vmatprep.subr.bf16.mxu0 0
      %829 = vmatpush1.bf16.msra.mxu0 0
      %830 = vmatprep.subr.bf16.mxu0 0
      %831 = vmatpush1.bf16.msra.mxu0 0
      %832 = vmatprep.subr.bf16.mxu0 0
      %833 = vmatpush1.bf16.msra.mxu0 0
      %834 = vmatprep.subr.bf16.mxu0 0
      %835 = vmatpush1.bf16.msra.mxu0 0
      %836 = vmatprep.subr.bf16.mxu0 0
      %837 = vmatpush1.bf16.msra.mxu0 0
      %838 = vmatprep.mubr.bf16.mxu0 0
      %839 = vmatmul.mubr.bf16.gmra.mrb[0].mxu0 %v795
      %v840 = vpop.f32.mrb[0].mxu0
      %v841 = vadd.f32 0.0, %v840
      %v842 = vpop.f32.mrb[0].mxu0
      %v843 = vadd.f32 0.0, %v842
      %v844 = vpop.f32.mrb[0].mxu0
      %v845 = vpop.f32.mrb[0].mxu0
      %846 = vdwg.mxu0
      %847 = vmatprep.subr.bf16.mxu0 0
      %848 = vmatpush1.bf16.msra.mxu0 %v804
      %849 = vmatprep.subr.bf16.mxu0 0
      %850 = vmatpush1.bf16.msra.mxu0 0
      %851 = vmatprep.subr.bf16.mxu0 0
      %852 = vmatpush1.bf16.msra.mxu0 0
      %853 = vmatprep.subr.bf16.mxu0 0
      %854 = vmatpush1.bf16.msra.mxu0 0
      %855 = vmatprep.subr.bf16.mxu0 0
      %856 = vmatpush1.bf16.msra.mxu0 0
      %857 = vmatprep.subr.bf16.mxu0 0
      %858 = vmatpush1.bf16.msra.mxu0 0
      %859 = vmatprep.subr.bf16.mxu0 0
      %860 = vmatpush1.bf16.msra.mxu0 0
      %861 = vmatprep.subr.bf16.mxu0 0
      %862 = vmatpush1.bf16.msra.mxu0 0
      %863 = vmatprep.subr.bf16.mxu0 0
      %864 = vmatpush1.bf16.msra.mxu0 0
      %865 = vmatprep.subr.bf16.mxu0 0
      %866 = vmatpush1.bf16.msra.mxu0 0
      %867 = vmatprep.subr.bf16.mxu0 0
      %868 = vmatpush1.bf16.msra.mxu0 0
      %869 = vmatprep.subr.bf16.mxu0 0
      %870 = vmatpush1.bf16.msra.mxu0 0
      %871 = vmatprep.subr.bf16.mxu0 0
      %872 = vmatpush1.bf16.msra.mxu0 0
      %873 = vmatprep.subr.bf16.mxu0 0
      %874 = vmatpush1.bf16.msra.mxu0 0
      %875 = vmatprep.subr.bf16.mxu0 0
      %876 = vmatpush1.bf16.msra.mxu0 0
      %877 = vmatprep.subr.bf16.mxu0 0
      %878 = vmatpush1.bf16.msra.mxu0 0
      %879 = vmatprep.mubr.bf16.mxu0 0
      %880 = vmatmul.mubr.bf16.gmra.mrb[0].mxu0 %v795
      %v881 = vpop.f32.mrb[0].mxu0
      %v882 = vadd.f32 0.0, %v881
      %v883 = vpop.f32.mrb[0].mxu0
      %v884 = vpop.f32.mrb[0].mxu0
      %v885 = vpop.f32.mrb[0].mxu0
      %886 = vdwg.mxu0
      %v887 = vadd.f32 %v782, %v841
      %v888 = vadd.f32 %v783, %v843
      %v889 = vadd.f32 %v784, %v882
      %890 = vrot.lane.b32.xlu0 %v264, 92
      %v891 = vpop.permute.xlu0 %890
      %892 = vrot.lane.b32.xlu0 %v272, 92
      %v893 = vpop.permute.xlu0 %892
      %894 = vrot.lane.b32.xlu0 %v271, 92
      %v895 = vpop.permute.xlu0 %894
      %vm896 = vcmask 752640
      %v897 = vsel %vm896, %v891, %v893
      %v898 = vsel %vm896, %v893, %v895
      %v900 = vsel %vm282, %v253, 0
      %v903 = vsel %vm286, %v897, 0
      %v906 = vsel %vm286, %v898, 0
      %v909 = vsel %vm286, %v895, 0
      %911 = vmatprep.subr.bf16.mxu0 %v906
      %912 = vmatpush1.bf16.msra.mxu0 %v903
      %913 = vmatprep.subr.bf16.mxu0 0
      %914 = vmatpush1.bf16.msra.mxu0 0
      %915 = vmatprep.subr.bf16.mxu0 0
      %916 = vmatpush1.bf16.msra.mxu0 0
      %917 = vmatprep.subr.bf16.mxu0 0
      %918 = vmatpush1.bf16.msra.mxu0 0
      %919 = vmatprep.subr.bf16.mxu0 0
      %920 = vmatpush1.bf16.msra.mxu0 0
      %921 = vmatprep.subr.bf16.mxu0 0
      %922 = vmatpush1.bf16.msra.mxu0 0
      %923 = vmatprep.subr.bf16.mxu0 0
      %924 = vmatpush1.bf16.msra.mxu0 0
      %925 = vmatprep.subr.bf16.mxu0 0
      %926 = vmatpush1.bf16.msra.mxu0 0
      %927 = vmatprep.subr.bf16.mxu0 0
      %928 = vmatpush1.bf16.msra.mxu0 0
      %929 = vmatprep.subr.bf16.mxu0 0
      %930 = vmatpush1.bf16.msra.mxu0 0
      %931 = vmatprep.subr.bf16.mxu0 0
      %932 = vmatpush1.bf16.msra.mxu0 0
      %933 = vmatprep.subr.bf16.mxu0 0
      %934 = vmatpush1.bf16.msra.mxu0 0
      %935 = vmatprep.subr.bf16.mxu0 0
      %936 = vmatpush1.bf16.msra.mxu0 0
      %937 = vmatprep.subr.bf16.mxu0 0
      %938 = vmatpush1.bf16.msra.mxu0 0
      %939 = vmatprep.subr.bf16.mxu0 0
      %940 = vmatpush1.bf16.msra.mxu0 0
      %941 = vmatprep.subr.bf16.mxu0 0
      %942 = vmatpush1.bf16.msra.mxu0 0
      %943 = vmatprep.mubr.bf16.mxu0 0
      %944 = vmatmul.mubr.bf16.gmra.mrb[0].mxu0 %v900
      %v945 = vpop.f32.mrb[0].mxu0
      %v946 = vadd.f32 0.0, %v945
      %v947 = vpop.f32.mrb[0].mxu0
      %v948 = vadd.f32 0.0, %v947
      %v949 = vpop.f32.mrb[0].mxu0
      %v950 = vpop.f32.mrb[0].mxu0
      %951 = vdwg.mxu0
      %952 = vmatprep.subr.bf16.mxu0 0
      %953 = vmatpush1.bf16.msra.mxu0 %v909
      %954 = vmatprep.subr.bf16.mxu0 0
      %955 = vmatpush1.bf16.msra.mxu0 0
      %956 = vmatprep.subr.bf16.mxu0 0
      %957 = vmatpush1.bf16.msra.mxu0 0
      %958 = vmatprep.subr.bf16.mxu0 0
      %959 = vmatpush1.bf16.msra.mxu0 0
      %960 = vmatprep.subr.bf16.mxu0 0
      %961 = vmatpush1.bf16.msra.mxu0 0
      %962 = vmatprep.subr.bf16.mxu0 0
      %963 = vmatpush1.bf16.msra.mxu0 0
      %964 = vmatprep.subr.bf16.mxu0 0
      %965 = vmatpush1.bf16.msra.mxu0 0
      %966 = vmatprep.subr.bf16.mxu0 0
      %967 = vmatpush1.bf16.msra.mxu0 0
      %968 = vmatprep.subr.bf16.mxu0 0
      %969 = vmatpush1.bf16.msra.mxu0 0
      %970 = vmatprep.subr.bf16.mxu0 0
      %971 = vmatpush1.bf16.msra.mxu0 0
      %972 = vmatprep.subr.bf16.mxu0 0
      %973 = vmatpush1.bf16.msra.mxu0 0
      %974 = vmatprep.subr.bf16.mxu0 0
      %975 = vmatpush1.bf16.msra.mxu0 0
      %976 = vmatprep.subr.bf16.mxu0 0
      %977 = vmatpush1.bf16.msra.mxu0 0
      %978 = vmatprep.subr.bf16.mxu0 0
      %979 = vmatpush1.bf16.msra.mxu0 0
      %980 = vmatprep.subr.bf16.mxu0 0
      %981 = vmatpush1.bf16.msra.mxu0 0
      %982 = vmatprep.subr.bf16.mxu0 0
      %983 = vmatpush1.bf16.msra.mxu0 0
      %984 = vmatprep.mubr.bf16.mxu0 0
      %985 = vmatmul.mubr.bf16.gmra.mrb[0].mxu0 %v900
      %v986 = vpop.f32.mrb[0].mxu0
      %v987 = vadd.f32 0.0, %v986
      %v988 = vpop.f32.mrb[0].mxu0
      %v989 = vpop.f32.mrb[0].mxu0
      %v990 = vpop.f32.mrb[0].mxu0
      %991 = vdwg.mxu0
      %v992 = vadd.f32 %v887, %v946
      %v993 = vadd.f32 %v888, %v948
      %v994 = vadd.f32 %v889, %v987
      %995 = vrot.lane.b32.xlu0 %v264, 91
      %v996 = vpop.permute.xlu0 %995
      %997 = vrot.lane.b32.xlu0 %v272, 91
      %v998 = vpop.permute.xlu0 %997
      %999 = vrot.lane.b32.xlu0 %v271, 91
      %v1000 = vpop.permute.xlu0 %999
      %vm1001 = vcmask 744448
      %v1002 = vsel %vm1001, %v996, %v998
      %v1003 = vsel %vm1001, %v998, %v1000
      %v1005 = vsel %vm282, %v254, 0
      %v1008 = vsel %vm286, %v1002, 0
      %v1011 = vsel %vm286, %v1003, 0
      %v1014 = vsel %vm286, %v1000, 0
      %1016 = vmatprep.subr.bf16.mxu0 %v1011
      %1017 = vmatpush1.bf16.msra.mxu0 %v1008
      %1018 = vmatprep.subr.bf16.mxu0 0
      %1019 = vmatpush1.bf16.msra.mxu0 0
      %1020 = vmatprep.subr.bf16.mxu0 0
      %1021 = vmatpush1.bf16.msra.mxu0 0
      %1022 = vmatprep.subr.bf16.mxu0 0
      %1023 = vmatpush1.bf16.msra.mxu0 0
      %1024 = vmatprep.subr.bf16.mxu0 0
      %1025 = vmatpush1.bf16.msra.mxu0 0
      %1026 = vmatprep.subr.bf16.mxu0 0
      %1027 = vmatpush1.bf16.msra.mxu0 0
      %1028 = vmatprep.subr.bf16.mxu0 0
      %1029 = vmatpush1.bf16.msra.mxu0 0
      %1030 = vmatprep.subr.bf16.mxu0 0
      %1031 = vmatpush1.bf16.msra.mxu0 0
      %1032 = vmatprep.subr.bf16.mxu0 0
      %1033 = vmatpush1.bf16.msra.mxu0 0
      %1034 = vmatprep.subr.bf16.mxu0 0
      %1035 = vmatpush1.bf16.msra.mxu0 0
      %1036 = vmatprep.subr.bf16.mxu0 0
      %1037 = vmatpush1.bf16.msra.mxu0 0
      %1038 = vmatprep.subr.bf16.mxu0 0
      %1039 = vmatpush1.bf16.msra.mxu0 0
      %1040 = vmatprep.subr.bf16.mxu0 0
      %1041 = vmatpush1.bf16.msra.mxu0 0
      %1042 = vmatprep.subr.bf16.mxu0 0
      %1043 = vmatpush1.bf16.msra.mxu0 0
      %1044 = vmatprep.subr.bf16.mxu0 0
      %1045 = vmatpush1.bf16.msra.mxu0 0
      %1046 = vmatprep.subr.bf16.mxu0 0
      %1047 = vmatpush1.bf16.msra.mxu0 0
      %1048 = vmatprep.mubr.bf16.mxu0 0
      %1049 = vmatmul.mubr.bf16.gmra.mrb[0].mxu0 %v1005
      %v1050 = vpop.f32.mrb[0].mxu0
      %v1051 = vadd.f32 0.0, %v1050
      %v1052 = vpop.f32.mrb[0].mxu0
      %v1053 = vadd.f32 0.0, %v1052
      %v1054 = vpop.f32.mrb[0].mxu0
      %v1055 = vpop.f32.mrb[0].mxu0
      %1056 = vdwg.mxu0
      %1057 = vmatprep.subr.bf16.mxu0 0
      %1058 = vmatpush1.bf16.msra.mxu0 %v1014
      %1059 = vmatprep.subr.bf16.mxu0 0
      %1060 = vmatpush1.bf16.msra.mxu0 0
      %1061 = vmatprep.subr.bf16.mxu0 0
      %1062 = vmatpush1.bf16.msra.mxu0 0
      %1063 = vmatprep.subr.bf16.mxu0 0
      %1064 = vmatpush1.bf16.msra.mxu0 0
      %1065 = vmatprep.subr.bf16.mxu0 0
      %1066 = vmatpush1.bf16.msra.mxu0 0
      %1067 = vmatprep.subr.bf16.mxu0 0
      %1068 = vmatpush1.bf16.msra.mxu0 0
      %1069 = vmatprep.subr.bf16.mxu0 0
      %1070 = vmatpush1.bf16.msra.mxu0 0
      %1071 = vmatprep.subr.bf16.mxu0 0
      %1072 = vmatpush1.bf16.msra.mxu0 0
      %1073 = vmatprep.subr.bf16.mxu0 0
      %1074 = vmatpush1.bf16.msra.mxu0 0
      %1075 = vmatprep.subr.bf16.mxu0 0
      %1076 = vmatpush1.bf16.msra.mxu0 0
      %1077 = vmatprep.subr.bf16.mxu0 0
      %1078 = vmatpush1.bf16.msra.mxu0 0
      %1079 = vmatprep.subr.bf16.mxu0 0
      %1080 = vmatpush1.bf16.msra.mxu0 0
      %1081 = vmatprep.subr.bf16.mxu0 0
      %1082 = vmatpush1.bf16.msra.mxu0 0
      %1083 = vmatprep.subr.bf16.mxu0 0
      %1084 = vmatpush1.bf16.msra.mxu0 0
      %1085 = vmatprep.subr.bf16.mxu0 0
      %1086 = vmatpush1.bf16.msra.mxu0 0
      %1087 = vmatprep.subr.bf16.mxu0 0
      %1088 = vmatpush1.bf16.msra.mxu0 0
      %1089 = vmatprep.mubr.bf16.mxu0 0
      %1090 = vmatmul.mubr.bf16.gmra.mrb[0].mxu0 %v1005
      %v1091 = vpop.f32.mrb[0].mxu0
      %v1092 = vadd.f32 0.0, %v1091
      %v1093 = vpop.f32.mrb[0].mxu0
      %v1094 = vpop.f32.mrb[0].mxu0
      %v1095 = vpop.f32.mrb[0].mxu0
      %1096 = vdwg.mxu0
      %v1097 = vadd.f32 %v992, %v1051
      %v1098 = vadd.f32 %v993, %v1053
      %v1099 = vadd.f32 %v994, %v1092
      %1100 = vrot.lane.b32.xlu0 %v264, 90
      %v1101 = vpop.permute.xlu0 %1100
      %1102 = vrot.lane.b32.xlu0 %v272, 90
      %v1103 = vpop.permute.xlu0 %1102
      %1104 = vrot.lane.b32.xlu0 %v271, 90
      %v1105 = vpop.permute.xlu0 %1104
      %vm1106 = vcmask 736256
      %v1107 = vsel %vm1106, %v1101, %v1103
      %v1108 = vsel %vm1106, %v1103, %v1105
      %v1110 = vsel %vm282, %v255, 0
      %v1113 = vsel %vm286, %v1107, 0
      %v1116 = vsel %vm286, %v1108, 0
      %v1119 = vsel %vm286, %v1105, 0
      %1121 = vmatprep.subr.bf16.mxu0 %v1116
      %1122 = vmatpush1.bf16.msra.mxu0 %v1113
      %1123 = vmatprep.subr.bf16.mxu0 0
      %1124 = vmatpush1.bf16.msra.mxu0 0
      %1125 = vmatprep.subr.bf16.mxu0 0
      %1126 = vmatpush1.bf16.msra.mxu0 0
      %1127 = vmatprep.subr.bf16.mxu0 0
      %1128 = vmatpush1.bf16.msra.mxu0 0
      %1129 = vmatprep.subr.bf16.mxu0 0
      %1130 = vmatpush1.bf16.msra.mxu0 0
      %1131 = vmatprep.subr.bf16.mxu0 0
      %1132 = vmatpush1.bf16.msra.mxu0 0
      %1133 = vmatprep.subr.bf16.mxu0 0
      %1134 = vmatpush1.bf16.msra.mxu0 0
      %1135 = vmatprep.subr.bf16.mxu0 0
      %1136 = vmatpush1.bf16.msra.mxu0 0
      %1137 = vmatprep.subr.bf16.mxu0 0
      %1138 = vmatpush1.bf16.msra.mxu0 0
      %1139 = vmatprep.subr.bf16.mxu0 0
      %1140 = vmatpush1.bf16.msra.mxu0 0
      %1141 = vmatprep.subr.bf16.mxu0 0
      %1142 = vmatpush1.bf16.msra.mxu0 0
      %1143 = vmatprep.subr.bf16.mxu0 0
      %1144 = vmatpush1.bf16.msra.mxu0 0
      %1145 = vmatprep.subr.bf16.mxu0 0
      %1146 = vmatpush1.bf16.msra.mxu0 0
      %1147 = vmatprep.subr.bf16.mxu0 0
      %1148 = vmatpush1.bf16.msra.mxu0 0
      %1149 = vmatprep.subr.bf16.mxu0 0
      %1150 = vmatpush1.bf16.msra.mxu0 0
      %1151 = vmatprep.subr.bf16.mxu0 0
      %1152 = vmatpush1.bf16.msra.mxu0 0
      %1153 = vmatprep.mubr.bf16.mxu0 0
      %1154 = vmatmul.mubr.bf16.gmra.mrb[0].mxu0 %v1110
      %v1155 = vpop.f32.mrb[0].mxu0
      %v1156 = vadd.f32 0.0, %v1155
      %v1157 = vpop.f32.mrb[0].mxu0
      %v1158 = vadd.f32 0.0, %v1157
      %v1159 = vpop.f32.mrb[0].mxu0
      %v1160 = vpop.f32.mrb[0].mxu0
      %1161 = vdwg.mxu0
      %1162 = vmatprep.subr.bf16.mxu0 0
      %1163 = vmatpush1.bf16.msra.mxu0 %v1119
      %1164 = vmatprep.subr.bf16.mxu0 0
      %1165 = vmatpush1.bf16.msra.mxu0 0
      %1166 = vmatprep.subr.bf16.mxu0 0
      %1167 = vmatpush1.bf16.msra.mxu0 0
      %1168 = vmatprep.subr.bf16.mxu0 0
      %1169 = vmatpush1.bf16.msra.mxu0 0
      %1170 = vmatprep.subr.bf16.mxu0 0
      %1171 = vmatpush1.bf16.msra.mxu0 0
      %1172 = vmatprep.subr.bf16.mxu0 0
      %1173 = vmatpush1.bf16.msra.mxu0 0
      %1174 = vmatprep.subr.bf16.mxu0 0
      %1175 = vmatpush1.bf16.msra.mxu0 0
      %1176 = vmatprep.subr.bf16.mxu0 0
      %1177 = vmatpush1.bf16.msra.mxu0 0
      %1178 = vmatprep.subr.bf16.mxu0 0
      %1179 = vmatpush1.bf16.msra.mxu0 0
      %1180 = vmatprep.subr.bf16.mxu0 0
      %1181 = vmatpush1.bf16.msra.mxu0 0
      %1182 = vmatprep.subr.bf16.mxu0 0
      %1183 = vmatpush1.bf16.msra.mxu0 0
      %1184 = vmatprep.subr.bf16.mxu0 0
      %1185 = vmatpush1.bf16.msra.mxu0 0
      %1186 = vmatprep.subr.bf16.mxu0 0
      %1187 = vmatpush1.bf16.msra.mxu0 0
      %1188 = vmatprep.subr.bf16.mxu0 0
      %1189 = vmatpush1.bf16.msra.mxu0 0
      %1190 = vmatprep.subr.bf16.mxu0 0
      %1191 = vmatpush1.bf16.msra.mxu0 0
      %1192 = vmatprep.subr.bf16.mxu0 0
      %1193 = vmatpush1.bf16.msra.mxu0 0
      %1194 = vmatprep.mubr.bf16.mxu0 0
      %1195 = vmatmul.mubr.bf16.gmra.mrb[0].mxu0 %v1110
      %v1196 = vpop.f32.mrb[0].mxu0
      %v1197 = vadd.f32 0.0, %v1196
      %v1198 = vpop.f32.mrb[0].mxu0
      %v1199 = vpop.f32.mrb[0].mxu0
      %v1200 = vpop.f32.mrb[0].mxu0
      %1201 = vdwg.mxu0
      %v1202 = vadd.f32 %v1097, %v1156
      %v1203 = vadd.f32 %v1098, %v1158
      %v1204 = vadd.f32 %v1099, %v1197
      %v1205 = vld [vmem:[%s3] sm:$0xff]
      %1207 = vset.pattern.permute.xlu0 0
      %1208 = vperm.xlu0 %1207, %v1205
      %v1209 = vpop.permute.xlu0 %1208
      %v1211 = vadd.f32 %v1202, %v1209
      %v1212 = vadd.f32 %v1203, %v1209
      %v1213 = vadd.f32 %v1204, %v1209
      %v1214 = vld [vmem:[%s4] sm:$0xff]
      %v1215 = vmul.f32 %v1214, 1.442695
      %v1216 = vpow.pop %v1215
      %1218 = vset.pattern.permute.xlu0 0
      %1219 = vperm.xlu0 %1218, %v1216
      %v1220 = vpop.permute.xlu0 %1219
      %v1222 = vmul.f32 %v1211, %v1220
      %v1223 = vmul.f32 %v1212, %v1220
      %v1224 = vmul.f32 %v1213, %v1220
      %v1225 = vld [vmem:[%s239] sm:$0xff]
      %v1226 = vld [vmem:[%s239 + $0x8] sm:$0xf]
      %v1229 = vcombine.low %v1222, %v1223
      %v1231 = vsub.f32 %v1225, %v1229
      %v1232 = vsub.f32 %v1226, %v1224
      %v1233 = vsub.f32 0.0, %v1222
      %v1234 = vsub.f32 0.0, %v1223
      %v1235 = vsub.f32 0.0, %v1224
      %v1236 = vmul.f32 %v1233, 1.442695
      %v1237 = vpow.pop %v1236
      %v1238 = vmul.f32 %v1234, 1.442695
      %v1239 = vpow.pop %v1238
      %v1240 = vmul.f32 %v1235, 1.442695
      %v1241 = vpow.pop %v1240
      %v1245 = vcombine.high %v1237, %v1239
      %v1246 = vcombine.high %v1241, %v1241
      %v1249 = vmul.f32 %v1231, %v1245
      %v1250 = vmul.f32 %v1232, %v1246
      %1251 = vst [vmem:[%s244] sm:$0xff] %v1249
      %vm1252 = vcmask 257024
      %1253 = vst.msk [vmem:[%s244 + $0x8] sm:$0xf] %vm1252, %v1250
      %p1254 = scmp.lt.s32.totalorder %s16, 1
      %s1255 = scalar_select %p1254, %s16, 1
      %s1256 = smul.addr %s1255, 3
      %s1257 = smul.addr %s1256, 4
      %s1258 = scalar_lea.vmem %s5, %s1257
      // Predicated region
      $region41: #{gaussianize_forward.1} parent=39 // pred_check
        %p1259 = pneg %p149
      $region42: #{gaussianize_forward.1} parent=39 // pred_check_branch
        %1261 = sbr.rel (%p1259) target = $region44
      $region43: #{gaussianize_forward.1} parent=39 // pred_region
        _
      $region44: #{gaussianize_forward.1} parent=39 // pred_fallthru
        _
    $region40: #{gaussianize_forward.1} parent=5 // pred_fallthru
      _
    %p1262 = scmp.le.s32.totalorder 2, %s11
    // Predicated region
    $region45: #{gaussianize_forward.1} parent=5 // pred_check
      %p1263 = pneg %p1262
    $region46: #{gaussianize_forward.1} parent=5 // pred_check_branch
      %1265 = sbr.rel (%p1263) target = $region48
    $region47: #{gaussianize_forward.1} parent=5 // pred_region
      %s1266 = ssub.s32 %s11, 2
      // Predicated region
      $region49: #{gaussianize_forward.1} parent=47 // pred_check
        %p1267 = pneg %p155
      $region50: #{gaussianize_forward.1} parent=47 // pred_check_branch
        %1269 = sbr.rel (%p1267) target = $region52
      $region51: #{gaussianize_forward.1} parent=47 // pred_region
        %p1270 = scmp.lt.s32.totalorder %s17, 1
        %s1271 = scalar_select %p1270, %s17, 1
        %s1272 = smul.addr %s1271, 3
        %s1273 = smul.addr %s1272, 4
        %s1274 = scalar_lea.vmem %s5, %s1273
      $region52: #{gaussianize_forward.1} parent=47 // pred_fallthru
        _
    $region48: #{gaussianize_forward.1} parent=5 // pred_fallthru
      _
  $region6: #{gaussianize_forward.1} parent=0 // loop_footer
    %s15 = sadd.s32 1, %s11
  $region7: #{gaussianize_forward.1} parent=0 // loop_footer_branch
    %10 = sbr.rel target = $region3
  $region8: #{gaussianize_forward.1} parent=0 // loop_exit
    _

</llo_original>
